<compile_context>
chip_gen: v6e
topology: v6e:2x2x1
jax: 0.10.0
libtpu: 0.0.40
codegen_flags: <defaults>
</compile_context>

<pallas_src>
import jax
import jax.numpy as jnp
from jax import lax
from jax.experimental import pallas as pl
from jax.experimental.pallas import tpu as pltpu

D_POOLER_OUT = 768   # hidden size of each BERT pooled output
N_CLASSES = 3
D_IN = 3             # number of modalities combined by the pooler Linear(3, 1)

_TILE_B_V5E = 512    # 3 inputs x 2 buffers x 512x768x4B  ~= 9 MiB  (< 16 MiB default)
_TILE_B_BIG = 1024   # 3 inputs x 2 buffers x 1024x768x4B ~= 18 MiB (< 32 MiB default)
_MIN_PALLAS_BATCH = 256   # below this, fused XLA beats kernel launch + pipeline
_MIN_SPLIT_B = 256        # don't split tiny batches across two TCs


def fl_pooler_kernel(pw_ref,                    # SMEM [3]: pooler Linear(3->1) weights
                     v_ref, a_ref, d_ref,       # VMEM [TILE_B, H] pooled features (f32 or bf16)
                     wclf_ref, bclf_ref,        # VMEM [3, H] (resident), [1, 3] (resident, fused bias)
                     out_ref):                  # VMEM [TILE_B, 3]
    # Dropout is identity in eval mode.
    # TODO(synk): training-mode dropout (drop_rate=0.2) not implemented; would need
    # pltpu.prng_seed/prng_random_bits masks applied per modality before the combine.
    w0 = pw_ref[0]
    w1 = pw_ref[1]
    w2 = pw_ref[2]

    # Equivalent to transposing [B,3,H] -> [B,H,3] and applying Linear(3,1)
    # (pooler bias already folded into bclf_ref by the wrapper).
    # Upcast to f32 so bf16 inputs still combine/accumulate in f32.
    pooled = (v_ref[...].astype(jnp.float32) * w0
              + a_ref[...].astype(jnp.float32) * w1
              + d_ref[...].astype(jnp.float32) * w2)                  # [TILE_B, H] f32

    # Classifier: contract hidden dim of [TILE_B, H] against dim 1 of [3, H]
    # (keeps 768 on the lane axis for the resident weight; f32 MXU accumulate).
    logits = lax.dot_general(
        pooled, wclf_ref[...],
        dimension_numbers=(((1,), (1,)), ((), ())),
        preferred_element_type=jnp.float32)                            # [TILE_B, 3]
    out_ref[...] = (logits + bclf_ref[...]).astype(out_ref.dtype)


def _device_tuning():
    """Returns (max_tile_b, balance_two_cores) based on the local TPU generation."""
    try:
        kind = jax.devices()[0].device_kind.lower()
    except Exception:
        kind = ""
    if "v7" in kind:
        return _TILE_B_BIG, True     # 2 TensorCores: keep the batch grid even
    if "v6" in kind:
        return _TILE_B_BIG, False    # 32 MiB default scoped VMEM
    return _TILE_B_V5E, False        # v5e / unknown: stay under 16 MiB default


def _choose_tile_b(B, max_tile, balance_two_cores):
    """Balanced, 8-aligned batch tile; even tile count on 2-TC chips."""
    if B <= max_tile and not (balance_two_cores and B >= 2 * _MIN_SPLIT_B):
        return B                      # single whole-array block
    n_tiles = -(-B // max_tile)       # cdiv
    if balance_two_cores and n_tiles % 2:
        n_tiles += 1                  # both TensorCores get equal work
    tile = -(-B // n_tiles)           # balanced -> no nearly-empty trailing block
    tile = ((tile + 7) // 8) * 8      # sublane (8) alignment for (tile, 768) blocks
    return min(tile, B)


def _fused_forward_jax(v, a, d, pooler_w, clf_w, clf_b_fused):
    """Small-batch fallback: same fused math, plain XLA (no kernel launch)."""
    pooled = (v.astype(jnp.float32) * pooler_w[0]
              + a.astype(jnp.float32) * pooler_w[1]
              + d.astype(jnp.float32) * pooler_w[2])
    return pooled @ clf_w.T + clf_b_fused


def fl_pooler_forward(v_pooled, a_pooled, d_pooled,
                      pooler_w, pooler_b, clf_w, clf_b,
                      *, tile_b=None, min_pallas_batch=_MIN_PALLAS_BATCH):
    """Args:
      v_pooled, a_pooled, d_pooled: [B, 768] pooled BERT outputs (f32 or bf16).
      pooler_w: [3] float32   (nn.Linear(3, 1).weight squeezed)
      pooler_b: [1] float32
      clf_w:    [3, 768] float32 (nn.Linear(768, 3).weight, native layout)
      clf_b:    [3] float32
    Returns logits [B, 3] float32.
    """
    B, H = v_pooled.shape
    assert H == D_POOLER_OUT

    # Fold the pooler bias into the classifier bias (wrapper-side glue):
    #   (pooled + pb) @ W^T + b == pooled @ W^T + (b + pb * W.sum(axis=1))
    clf_b_fused = (clf_b + pooler_b[0] * jnp.sum(clf_w, axis=1)).reshape(1, N_CLASSES)

    # Launch overhead dominates at tiny B: use the fused XLA path instead.
    if B < min_pallas_batch:
        return _fused_forward_jax(v_pooled, a_pooled, d_pooled,
                                  pooler_w, clf_w, clf_b_fused)

    if tile_b is None:
        max_tile, balance = _device_tuning()
        tile_b = _choose_tile_b(B, max_tile, balance)
    tile_b = min(tile_b, B)
    grid = (pl.cdiv(B, tile_b),)

    feat_bytes = jnp.dtype(v_pooled.dtype).itemsize
    cost = pl.CostEstimate(
        flops=11 * B * H,                                   # combine (~5BH) + matmul (6BH)
        transcendentals=0,
        bytes_accessed=3 * B * H * feat_bytes               # three pooled inputs
                       + B * N_CLASSES * 4                  # logits out
                       + (N_CLASSES * H + N_CLASSES + D_IN) * 4)  # resident params

    feat_spec = pl.BlockSpec((tile_b, H), lambda i: (i, 0))
    in_specs = [
        pl.BlockSpec(memory_space=pltpu.MemorySpace.SMEM),   # pooler_w scalars
        feat_spec, feat_spec, feat_spec,                     # v, a, d (batch-tiled)
        pl.BlockSpec((N_CLASSES, H), lambda i: (0, 0)),      # clf_w resident across grid
        pl.BlockSpec((1, N_CLASSES), lambda i: (0, 0)),      # fused bias resident
    ]
    out_specs = pl.BlockSpec((tile_b, N_CLASSES), lambda i: (i, 0))

    return pl.pallas_call(
        fl_pooler_kernel,
        out_shape=jax.ShapeDtypeStruct((B, N_CLASSES), jnp.float32),
        grid=grid,
        in_specs=in_specs,
        out_specs=out_specs,
        cost_estimate=cost,
        compiler_params=pltpu.CompilerParams(
            dimension_semantics=("parallel",)),
    )(pooler_w, v_pooled, a_pooled, d_pooled, clf_w, clf_b_fused)


def reference_forward(v, a, d, pooler_w, pooler_b, clf_w, clf_b):
    # Pure-JAX f32 reference mirroring the PyTorch module (eval-mode dropout).
    v = v.astype(jnp.float32); a = a.astype(jnp.float32); d = d.astype(jnp.float32)
    concated = jnp.concatenate([v, a, d], axis=1)                 # [B, 3H]
    concated = concated.reshape(concated.shape[0], 3, -1)         # [B, 3, H]
    concated = jnp.swapaxes(concated, -2, -1)                     # [B, H, 3]
    pooled = concated @ pooler_w.reshape(3, 1) + pooler_b         # [B, H, 1]
    pooled = pooled[..., 0]                                       # [B, H]
    return pooled @ clf_w.T + clf_b                               # [B, 3]


def _run_check(B, key, dtype=jnp.float32, force_kernel=False, atol=1e-4, rtol=1e-4):
    kv, ka, kd, kpw, kpb, kcw, kcb = jax.random.split(key, 7)

    # Synthetic pooled BERT outputs (the backbones themselves are not translatable).
    v_pooled = jax.random.normal(kv, (B, D_POOLER_OUT), dtype=jnp.float32).astype(dtype)
    a_pooled = jax.random.normal(ka, (B, D_POOLER_OUT), dtype=jnp.float32).astype(dtype)
    d_pooled = jax.random.normal(kd, (B, D_POOLER_OUT), dtype=jnp.float32).astype(dtype)

    # Deterministic parameter init (matching nn.Linear shapes).
    pooler_w = jax.random.normal(kpw, (D_IN,), dtype=jnp.float32) * 0.1       # Linear(3,1).weight
    pooler_b = jax.random.normal(kpb, (1,), dtype=jnp.float32) * 0.1          # Linear(3,1).bias
    clf_w = jax.random.normal(kcw, (N_CLASSES, D_POOLER_OUT), dtype=jnp.float32) * 0.02
    clf_b = jax.random.normal(kcb, (N_CLASSES,), dtype=jnp.float32) * 0.02

    logits = jax.block_until_ready(
        fl_pooler_forward(v_pooled, a_pooled, d_pooled,
                          pooler_w, pooler_b, clf_w, clf_b,
                          min_pallas_batch=0 if force_kernel else _MIN_PALLAS_BATCH))
    ref = reference_forward(v_pooled, a_pooled, d_pooled,
                            pooler_w, pooler_b, clf_w, clf_b)
    assert logits.shape == (B, N_CLASSES)
    assert jnp.allclose(logits, ref, atol=atol, rtol=rtol), \
        f"mismatch vs reference (B={B}, dtype={dtype})"


if __name__ == "__main__":
    key = jax.random.PRNGKey(0)
    k_small, k_tiled, k_bf16, k_fallback = jax.random.split(key, 4)

    # Small demo shape: force the kernel path (single whole-array block, grid=(1,)).
    _run_check(2, k_small, force_kernel=True)

    # Batch-tiled path with balanced tiles / partial last block, f32 inputs.
    _run_check(1040, k_tiled)

    # bf16 pooled features from the backbones (halved HBM read), f32 accumulate.
    _run_check(1040, k_bf16, dtype=jnp.bfloat16, atol=1e-2, rtol=1e-2)

    # Tiny-batch inference: pure-JAX fallback (no pallas_call launch).
    _run_check(8, k_fallback)

    print("KERNEL_OK")
</pallas_src>

<mosaic_0001>
module attributes {stable_mosaic.version = 11 : i64} {
  func.func @fl_pooler_kernel(%arg0: i32, %arg1: memref<3xf32, #tpu.memory_space<smem>>, %arg2: memref<2x768xf32, #tpu.memory_space<vmem>>, %arg3: memref<2x768xf32, #tpu.memory_space<vmem>>, %arg4: memref<2x768xf32, #tpu.memory_space<vmem>>, %arg5: memref<3x768xf32, #tpu.memory_space<vmem>>, %arg6: memref<1x3xf32, #tpu.memory_space<vmem>>, %arg7: memref<2x3xf32, #tpu.memory_space<vmem>>) attributes {dimension_semantics = [#tpu.dimension_semantics<parallel>], iteration_bounds = array<i64: 1>, scalar_prefetch = 0 : i64, scratch_operands = 0 : i64, tpu.core_type = #tpu.core_type<tc>, window_params = [{transform_indices = @transform_0, window_bounds = array<i64: 3>}, {transform_indices = @transform_1, window_bounds = array<i64: 2, 768>}, {transform_indices = @transform_2, window_bounds = array<i64: 2, 768>}, {transform_indices = @transform_3, window_bounds = array<i64: 2, 768>}, {pipeline_mode = #tpu.pipeline_mode<synchronous>, transform_indices = @transform_4, window_bounds = array<i64: 3, 768>}, {pipeline_mode = #tpu.pipeline_mode<synchronous>, transform_indices = @transform_5, window_bounds = array<i64: 1, 3>}, {transform_indices = @transform_6, window_bounds = array<i64: 2, 3>}]} {
    %c0 = arith.constant 0 : index
    %0 = memref.load %arg1[%c0] : memref<3xf32, #tpu.memory_space<smem>>
    %c1 = arith.constant 1 : index
    %1 = memref.load %arg1[%c1] : memref<3xf32, #tpu.memory_space<smem>>
    %c2 = arith.constant 2 : index
    %2 = memref.load %arg1[%c2] : memref<3xf32, #tpu.memory_space<smem>>
    %c0_0 = arith.constant 0 : index
    %c0_1 = arith.constant 0 : index
    %3 = vector.load %arg2[%c0_0, %c0_1] : memref<2x768xf32, #tpu.memory_space<vmem>>, vector<2x768xf32>
    %4 = vector.broadcast %0 : f32 to vector<2x768xf32>
    %5 = arith.mulf %3, %4 : vector<2x768xf32>
    %c0_2 = arith.constant 0 : index
    %c0_3 = arith.constant 0 : index
    %6 = vector.load %arg3[%c0_2, %c0_3] : memref<2x768xf32, #tpu.memory_space<vmem>>, vector<2x768xf32>
    %7 = vector.broadcast %1 : f32 to vector<2x768xf32>
    %8 = arith.mulf %6, %7 : vector<2x768xf32>
    %9 = arith.addf %5, %8 : vector<2x768xf32>
    %c0_4 = arith.constant 0 : index
    %c0_5 = arith.constant 0 : index
    %10 = vector.load %arg4[%c0_4, %c0_5] : memref<2x768xf32, #tpu.memory_space<vmem>>, vector<2x768xf32>
    %11 = vector.broadcast %2 : f32 to vector<2x768xf32>
    %12 = arith.mulf %10, %11 : vector<2x768xf32>
    %13 = arith.addf %9, %12 : vector<2x768xf32>
    %c0_6 = arith.constant 0 : index
    %c0_7 = arith.constant 0 : index
    %14 = vector.load %arg5[%c0_6, %c0_7] : memref<3x768xf32, #tpu.memory_space<vmem>>, vector<3x768xf32>
    %cst = arith.constant dense<0.000000e+00> : vector<2x3xf32>
    %15 = tpu.matmul %13, %14, %cst {dimension_numbers = #tpu.dot_dimension_numbers<[1], [1], [0], [0], [0, 0, 1, 0], [], []>} : vector<2x768xf32>, vector<3x768xf32>, vector<2x3xf32> -> vector<2x3xf32>
    %c0_8 = arith.constant 0 : index
    %c0_9 = arith.constant 0 : index
    %16 = vector.load %arg6[%c0_8, %c0_9] : memref<1x3xf32, #tpu.memory_space<vmem>>, vector<1x3xf32>
    %17 = vector.broadcast %16 : vector<1x3xf32> to vector<2x3xf32>
    %18 = arith.addf %15, %17 : vector<2x3xf32>
    %c0_10 = arith.constant 0 : index
    %c0_11 = arith.constant 0 : index
    %19 = vector.load %arg7[%c0_10, %c0_11] : memref<2x3xf32, #tpu.memory_space<vmem>>, vector<2x3xf32>
    tpu.vector_store %arg7[%c0_10, %c0_11], %18 {strides = array<i32>} : memref<2x3xf32, #tpu.memory_space<vmem>>, vector<2x3xf32>,
    return
  }
  func.func @transform_0(%arg0: i32) -> i32 {
    %c0_i32 = arith.constant 0 : i32
    %c0_i32_0 = arith.constant 0 : i32
    return %c0_i32 : i32
  }
  func.func @transform_1(%arg0: i32) -> (i32, i32) {
    %c0_i32 = arith.constant 0 : i32
    %c0_i32_0 = arith.constant 0 : i32
    return %arg0, %c0_i32 : i32, i32
  }
  func.func @transform_2(%arg0: i32) -> (i32, i32) {
    %c0_i32 = arith.constant 0 : i32
    %c0_i32_0 = arith.constant 0 : i32
    return %arg0, %c0_i32 : i32, i32
  }
  func.func @transform_3(%arg0: i32) -> (i32, i32) {
    %c0_i32 = arith.constant 0 : i32
    %c0_i32_0 = arith.constant 0 : i32
    return %arg0, %c0_i32 : i32, i32
  }
  func.func @transform_4(%arg0: i32) -> (i32, i32) {
    %c0_i32 = arith.constant 0 : i32
    %c0_i32_0 = arith.constant 0 : i32
    %c0_i32_1 = arith.constant 0 : i32
    return %c0_i32, %c0_i32_0 : i32, i32
  }
  func.func @transform_5(%arg0: i32) -> (i32, i32) {
    %c0_i32 = arith.constant 0 : i32
    %c0_i32_0 = arith.constant 0 : i32
    %c0_i32_1 = arith.constant 0 : i32
    return %c0_i32, %c0_i32_0 : i32, i32
  }
  func.func @transform_6(%arg0: i32) -> (i32, i32) {
    %c0_i32 = arith.constant 0 : i32
    %c0_i32_0 = arith.constant 0 : i32
    return %arg0, %c0_i32 : i32, i32
  }
}

</mosaic_0001>

<llo_original>
// kernel: tpu_custom_call.1
$region0: #{tpu_custom_call.1}
  #allocation0 [shape = 'u32[]', space=smem, size = 0x4, offset = 0x4, fixed_abs, tag = 'smem constant byte address 0x4 - core index']
  #allocation1 [shape = 'u32[144,128]{1,0:T(1,128)}', space=vmem, size = 0x12000, scoped, tag = 'internal scratch']
  %s0 = inlined_call_operand.hbm [shape: f32[3], index: 0, kind: input, shape index: {}]
  %s1 = inlined_call_operand.hbm [shape: f32[2,768], index: 1, kind: input, shape index: {}]
  %s2 = inlined_call_operand.hbm [shape: f32[2,768], index: 2, kind: input, shape index: {}]
  %s3 = inlined_call_operand.hbm [shape: f32[2,768], index: 3, kind: input, shape index: {}]
  %s4 = inlined_call_operand.hbm [shape: f32[3,768], index: 4, kind: input, shape index: {}]
  %s5 = inlined_call_operand.vmem [shape: f32[1,3], index: 5, kind: input, shape index: {}]
  %s6 = inlined_call_operand.hbm [shape: f32[2,3], index: 6, kind: output, shape index: {}]
  %s7 = sld [smem:[#allocation0]]
  $region54: #{tpu_custom_call.1} parent=0
    _
  %s9 = ssub.s32 1, %s7
  %s10 = scalar_select 0, %s9, %s7
  $region1: #{tpu_custom_call.1} parent=0
    #allocation2 [shape = 'u8[512]{0}', space=smem, size = 0x200, scoped, tag = 'input window, operand 0, single buffered']
    #allocation3 [shape = 's32[1]{0}', space=sflag, size = 0x4, scoped, tag = 'scoped memory for tpu_custom_call.1']
    #allocation4 [shape = 's32[1]{0}', space=sflag, size = 0x4, scoped, tag = 'scoped memory for tpu_custom_call.1']
    #allocation5 [shape = 's32[1]{0}', space=sflag, size = 0x4, scoped, tag = 'scoped memory for tpu_custom_call.1']
    #allocation6 [shape = 'u8[6144]{0}', space=vmem, size = 0x1800, scoped, tag = 'input window, operand 1, single buffered']
    #allocation7 [shape = 'u8[6144]{0}', space=vmem, size = 0x1800, scoped, tag = 'input window, operand 2, single buffered']
    #allocation8 [shape = 's32[1]{0}', space=sflag, size = 0x4, scoped, tag = 'scoped memory for tpu_custom_call.1']
    #allocation9 [shape = 'u8[6144]{0}', space=vmem, size = 0x1800, scoped, tag = 'input window, operand 3, single buffered']
    #allocation10 [shape = 'u8[12288]{0}', space=vmem, size = 0x3000, scoped, tag = 'input window, operand 4, single buffered']
    #allocation11 [shape = 's32[1]{0}', space=sflag, size = 0x4, scoped, tag = 'scoped memory for tpu_custom_call.1']
    #allocation12 [shape = 'u8[1024]{0}', space=vmem, size = 0x400, scoped, tag = 'output window, operand 0, single buffered']
    %11 = vsyncpa [#allocation5], 0
    %12 = vsyncpa [#allocation3], 0
    %13 = vsyncpa [#allocation8], 0
    %14 = vsyncpa [#allocation11], 0
    %15 = vsyncpa [#allocation4], 0
    // Predicated region
    $region2: #{tpu_custom_call.1} parent=1 // pred_check
      _
    $region3: #{tpu_custom_call.1} parent=1 // pred_check_branch
      %17 = sbr.rel (0) target = $region5
    $region4: #{tpu_custom_call.1} parent=1 // pred_region
      %s19 = ssub.s32 16, 16
      %20 = vsyncadd [#allocation5], %s19
      %23 = dma.hbm_to_smem %s0, 16, [#allocation2], [#allocation5]
    $region5: #{tpu_custom_call.1} parent=1 // pred_fallthru
      _
    // Predicated region
    $region6: #{tpu_custom_call.1} parent=1 // pred_check
      _
    $region7: #{tpu_custom_call.1} parent=1 // pred_check_branch
      %25 = sbr.rel (0) target = $region9
    $region8: #{tpu_custom_call.1} parent=1 // pred_region
      %s27 = ssub.s32 192, 192
      %28 = vsyncadd [#allocation3], %s27
      %s30 = sshll.u32 [#allocation6], 4
      %s31 = int_to_ptr.vmem [resolvable:$true] %s30
      %33 = dma.hbm_to_vmem [thread:$0]  %s1, 192, %s31, [#allocation3]
    $region9: #{tpu_custom_call.1} parent=1 // pred_fallthru
      _
    // Predicated region
    $region10: #{tpu_custom_call.1} parent=1 // pred_check
      _
    $region11: #{tpu_custom_call.1} parent=1 // pred_check_branch
      %35 = sbr.rel (0) target = $region13
    $region12: #{tpu_custom_call.1} parent=1 // pred_region
      %s37 = ssub.s32 192, 192
      %38 = vsyncadd [#allocation8], %s37
      %s40 = sshll.u32 [#allocation7], 4
      %s41 = int_to_ptr.vmem [resolvable:$true] %s40
      %43 = dma.hbm_to_vmem [thread:$0]  %s2, 192, %s41, [#allocation8]
    $region13: #{tpu_custom_call.1} parent=1 // pred_fallthru
      _
    // Predicated region
    $region14: #{tpu_custom_call.1} parent=1 // pred_check
      _
    $region15: #{tpu_custom_call.1} parent=1 // pred_check_branch
      %45 = sbr.rel (0) target = $region17
    $region16: #{tpu_custom_call.1} parent=1 // pred_region
      %s47 = ssub.s32 192, 192
      %48 = vsyncadd [#allocation8], %s47
      %s50 = sshll.u32 [#allocation9], 4
      %s51 = int_to_ptr.vmem [resolvable:$true] %s50
      %53 = dma.hbm_to_vmem [thread:$0]  %s3, 192, %s51, [#allocation8]
    $region17: #{tpu_custom_call.1} parent=1 // pred_fallthru
      _
    // Predicated region
    $region18: #{tpu_custom_call.1} parent=1 // pred_check
      _
    $region19: #{tpu_custom_call.1} parent=1 // pred_check_branch
      %55 = sbr.rel (0) target = $region21
    $region20: #{tpu_custom_call.1} parent=1 // pred_region
      %s57 = ssub.s32 384, 384
      %58 = vsyncadd [#allocation11], %s57
      %s60 = sshll.u32 [#allocation10], 4
      %s61 = int_to_ptr.vmem [resolvable:$true] %s60
      %63 = dma.hbm_to_vmem [thread:$0]  %s4, 384, %s61, [#allocation11]
    $region21: #{tpu_custom_call.1} parent=1 // pred_fallthru
      _
    // Predicated region
    $region22: #{tpu_custom_call.1} parent=1 // pred_check
      _
    $region23: #{tpu_custom_call.1} parent=1 // pred_check_branch
      %65 = sbr.rel (0) target = $region25
    $region24: #{tpu_custom_call.1} parent=1 // pred_region
      _
    $region25: #{tpu_custom_call.1} parent=1 // pred_fallthru
      _
    // Predicated region
    $region26: #{tpu_custom_call.1} parent=1 // pred_check
      _
    $region27: #{tpu_custom_call.1} parent=1 // pred_check_branch
      %67 = sbr.rel (0) target = $region29
    $region28: #{tpu_custom_call.1} parent=1 // pred_region
      %68 = dma.done [#allocation5], 16
    $region29: #{tpu_custom_call.1} parent=1 // pred_fallthru
      _
    // Predicated region
    $region30: #{tpu_custom_call.1} parent=1 // pred_check
      _
    $region31: #{tpu_custom_call.1} parent=1 // pred_check_branch
      %70 = sbr.rel (0) target = $region33
    $region32: #{tpu_custom_call.1} parent=1 // pred_region
      %71 = dma.done [#allocation3], 192
    $region33: #{tpu_custom_call.1} parent=1 // pred_fallthru
      _
    // Predicated region
    $region34: #{tpu_custom_call.1} parent=1 // pred_check
      _
    $region35: #{tpu_custom_call.1} parent=1 // pred_check_branch
      %73 = sbr.rel (0) target = $region37
    $region36: #{tpu_custom_call.1} parent=1 // pred_region
      %74 = dma.done [#allocation8], 192
    $region37: #{tpu_custom_call.1} parent=1 // pred_fallthru
      _
    // Predicated region
    $region38: #{tpu_custom_call.1} parent=1 // pred_check
      _
    $region39: #{tpu_custom_call.1} parent=1 // pred_check_branch
      %76 = sbr.rel (0) target = $region41
    $region40: #{tpu_custom_call.1} parent=1 // pred_region
      %77 = dma.done [#allocation8], 192
    $region41: #{tpu_custom_call.1} parent=1 // pred_fallthru
      _
    // Predicated region
    $region42: #{tpu_custom_call.1} parent=1 // pred_check
      _
    $region43: #{tpu_custom_call.1} parent=1 // pred_check_branch
      %79 = sbr.rel (0) target = $region45
    $region44: #{tpu_custom_call.1} parent=1 // pred_region
      %80 = dma.done [#allocation11], 384
    $region45: #{tpu_custom_call.1} parent=1 // pred_fallthru
      _
    %81 = sfence
    %s82 = sld [smem:[#allocation2]]
    %s83 = sld [smem:[#allocation2 + $0x1]]
    %s84 = sld [smem:[#allocation2 + $0x2]]
    %v85 = vld [vmem:[#allocation6] sm:$0xff]
    %v86 = vld [vmem:[#allocation6 + $0x8] sm:$0xf]
    %v87 = vstv %s82
    %v88 = vmul.f32 %v85, %v87
    %v89 = vmul.f32 %v86, %v87
    %v90 = vld [vmem:[#allocation7] sm:$0xff]
    %v91 = vld [vmem:[#allocation7 + $0x8] sm:$0xf]
    %v92 = vstv %s83
    %v93 = vmul.f32 %v90, %v92
    %v94 = vmul.f32 %v91, %v92
    %v95 = vadd.f32 %v88, %v93
    %v96 = vadd.f32 %v89, %v94
    %v97 = vld [vmem:[#allocation9] sm:$0xff]
    %v98 = vld [vmem:[#allocation9 + $0x8] sm:$0xf]
    %v99 = vstv %s84
    %v100 = vmul.f32 %v97, %v99
    %v101 = vmul.f32 %v98, %v99
    %v102 = vadd.f32 %v95, %v100
    %v103 = vadd.f32 %v96, %v101
    %v104 = vld [vmem:[#allocation10] sm:$0x77]
    %v105 = vld [vmem:[#allocation10 + $0x8] sm:$0x77]
    %v106 = vld [vmem:[#allocation10 + $0x10] sm:$0x77]
    %v107 = vld [vmem:[%s5] sm:$0x1]
    %v109 = vlaneseq
    %v110 = vshrl.u32 %v109, 7
    %v111 = vsub.s32 0, %v110
    %v112 = vrot.slane %v107, %v111
    %v116 = vcombine.high %v102, %v102
    %v118 = vunpack.c.l.s4 1983009808
    %v119 = vunpack.c.0.s8 %v118
    %v120 = vlaneseq
    %v121 = vshrl.u32 %v120, 7
    %v122 = vsub.s32 %v119, %v121
    %v123 = vrot.slane %v102, %v122
    %v125 = vunpack.c.l.s4 1983009808
    %v126 = vunpack.c.0.s8 %v125
    %v127 = vlaneseq
    %v128 = vshrl.u32 %v127, 7
    %v129 = vsub.s32 %v126, %v128
    %v130 = vrot.slane %v116, %v129
    %v131 = vcombine.high %v123, %v123
    %v132 = vcombine.high %v130, %v130
    %v134 = vunpack.c.l.s4 1983009808
    %v135 = vunpack.c.0.s8 %v134
    %v136 = vlaneseq
    %v137 = vshrl.u32 %v136, 7
    %v138 = vsub.s32 %v135, %v137
    %v139 = vrot.slane %v103, %v138
    %v140 = vcombine.high %v139, %v139
    %v150 = vcombine.high %v104, %v104
    %v151 = vcombine.high %v105, %v105
    %v152 = vcombine.high %v106, %v106
    %156 = vmatprep.subr.mxu0 0.0
    %157 = vmatpush1.xpose.msra.mxu0 0.0
    %158 = vmatprep.subr.mxu0 0.0
    %159 = vmatpush1.xpose.msra.mxu0 0.0
    %160 = vmatprep.subr.mxu0 0.0
    %161 = vmatpush1.xpose.msra.mxu0 0.0
    %162 = vmatprep.subr.mxu0 0.0
    %163 = vmatpush1.xpose.msra.mxu0 0.0
    %164 = vmatprep.subr.mxu0 0.0
    %165 = vmatpush1.xpose.msra.mxu0 0.0
    %166 = vmatprep.subr.mxu0 0.0
    %167 = vmatpush1.xpose.msra.mxu0 0.0
    %168 = vmatprep.subr.mxu0 0.0
    %169 = vmatpush1.xpose.msra.mxu0 0.0
    %170 = vmatprep.subr.mxu0 0.0
    %171 = vmatpush1.xpose.msra.mxu0 0.0
    %172 = vmatprep.subr.mxu0 0.0
    %173 = vmatpush1.xpose.msra.mxu0 0.0
    %174 = vmatprep.subr.mxu0 0.0
    %175 = vmatpush1.xpose.msra.mxu0 0.0
    %176 = vmatprep.subr.mxu0 0.0
    %177 = vmatpush1.xpose.msra.mxu0 0.0
    %178 = vmatprep.subr.mxu0 0.0
    %179 = vmatpush1.xpose.msra.mxu0 0.0
    %180 = vmatprep.subr.mxu0 0.0
    %181 = vmatpush1.xpose.msra.mxu0 0.0
    %182 = vmatprep.subr.mxu0 0.0
    %183 = vmatpush1.xpose.msra.mxu0 0.0
    %184 = vmatprep.subr.mxu0 0.0
    %185 = vmatpush1.xpose.msra.mxu0 0.0
    %186 = vmatprep.subr.mxu0 %v150
    %187 = vmatpush1.xpose.msra.mxu0 %v104
    %188 = vmatprep.subr.mxu0 0.0
    %189 = vmatpush2.xpose.msra.mxu0 0.0
    %190 = vmatprep.subr.mxu0 0.0
    %191 = vmatpush2.xpose.msra.mxu0 0.0
    %192 = vmatprep.subr.mxu0 0.0
    %193 = vmatpush2.xpose.msra.mxu0 0.0
    %194 = vmatprep.subr.mxu0 0.0
    %195 = vmatpush2.xpose.msra.mxu0 0.0
    %196 = vmatprep.subr.mxu0 0.0
    %197 = vmatpush2.xpose.msra.mxu0 0.0
    %198 = vmatprep.subr.mxu0 0.0
    %199 = vmatpush2.xpose.msra.mxu0 0.0
    %200 = vmatprep.subr.mxu0 0.0
    %201 = vmatpush2.xpose.msra.mxu0 0.0
    %202 = vmatprep.subr.mxu0 0.0
    %203 = vmatpush2.xpose.msra.mxu0 0.0
    %204 = vmatprep.subr.mxu0 0.0
    %205 = vmatpush2.xpose.msra.mxu0 0.0
    %206 = vmatprep.subr.mxu0 0.0
    %207 = vmatpush2.xpose.msra.mxu0 0.0
    %208 = vmatprep.subr.mxu0 0.0
    %209 = vmatpush2.xpose.msra.mxu0 0.0
    %210 = vmatprep.subr.mxu0 0.0
    %211 = vmatpush2.xpose.msra.mxu0 0.0
    %212 = vmatprep.subr.mxu0 0.0
    %213 = vmatpush2.xpose.msra.mxu0 0.0
    %214 = vmatprep.subr.mxu0 0.0
    %215 = vmatpush2.xpose.msra.mxu0 0.0
    %216 = vmatprep.subr.mxu0 0.0
    %217 = vmatpush2.xpose.msra.mxu0 0.0
    %218 = vmatprep.subr.mxu0 0.0
    %219 = vmatpush2.xpose.msra.mxu0 0.0
    %220 = vmatprep.mubr.f32.mxu0 %v131
    %221 = vmatmul.mubr.f32.gmra.mxu0 %v123
    %v222 = vpop.f32.mrf.mxu0
    %v223 = vadd.f32 %v112, %v222
    %v224 = vpop.f32.mrf.mxu0
    %225 = vdwg.mxu0
    %226 = vmatprep.subr.mxu0 0.0
    %227 = vmatpush1.xpose.msra.mxu0 0.0
    %228 = vmatprep.subr.mxu0 0.0
    %229 = vmatpush1.xpose.msra.mxu0 0.0
    %230 = vmatprep.subr.mxu0 0.0
    %231 = vmatpush1.xpose.msra.mxu0 0.0
    %232 = vmatprep.subr.mxu0 0.0
    %233 = vmatpush1.xpose.msra.mxu0 0.0
    %234 = vmatprep.subr.mxu0 0.0
    %235 = vmatpush1.xpose.msra.mxu0 0.0
    %236 = vmatprep.subr.mxu0 0.0
    %237 = vmatpush1.xpose.msra.mxu0 0.0
    %238 = vmatprep.subr.mxu0 0.0
    %239 = vmatpush1.xpose.msra.mxu0 0.0
    %240 = vmatprep.subr.mxu0 0.0
    %241 = vmatpush1.xpose.msra.mxu0 0.0
    %242 = vmatprep.subr.mxu0 0.0
    %243 = vmatpush1.xpose.msra.mxu0 0.0
    %244 = vmatprep.subr.mxu0 0.0
    %245 = vmatpush1.xpose.msra.mxu0 0.0
    %246 = vmatprep.subr.mxu0 0.0
    %247 = vmatpush1.xpose.msra.mxu0 0.0
    %248 = vmatprep.subr.mxu0 0.0
    %249 = vmatpush1.xpose.msra.mxu0 0.0
    %250 = vmatprep.subr.mxu0 0.0
    %251 = vmatpush1.xpose.msra.mxu0 0.0
    %252 = vmatprep.subr.mxu0 0.0
    %253 = vmatpush1.xpose.msra.mxu0 0.0
    %254 = vmatprep.subr.mxu0 0.0
    %255 = vmatpush1.xpose.msra.mxu0 0.0
    %256 = vmatprep.subr.mxu0 %v151
    %257 = vmatpush1.xpose.msra.mxu0 %v105
    %258 = vmatprep.subr.mxu0 0.0
    %259 = vmatpush2.xpose.msra.mxu0 0.0
    %260 = vmatprep.subr.mxu0 0.0
    %261 = vmatpush2.xpose.msra.mxu0 0.0
    %262 = vmatprep.subr.mxu0 0.0
    %263 = vmatpush2.xpose.msra.mxu0 0.0
    %264 = vmatprep.subr.mxu0 0.0
    %265 = vmatpush2.xpose.msra.mxu0 0.0
    %266 = vmatprep.subr.mxu0 0.0
    %267 = vmatpush2.xpose.msra.mxu0 0.0
    %268 = vmatprep.subr.mxu0 0.0
    %269 = vmatpush2.xpose.msra.mxu0 0.0
    %270 = vmatprep.subr.mxu0 0.0
    %271 = vmatpush2.xpose.msra.mxu0 0.0
    %272 = vmatprep.subr.mxu0 0.0
    %273 = vmatpush2.xpose.msra.mxu0 0.0
    %274 = vmatprep.subr.mxu0 0.0
    %275 = vmatpush2.xpose.msra.mxu0 0.0
    %276 = vmatprep.subr.mxu0 0.0
    %277 = vmatpush2.xpose.msra.mxu0 0.0
    %278 = vmatprep.subr.mxu0 0.0
    %279 = vmatpush2.xpose.msra.mxu0 0.0
    %280 = vmatprep.subr.mxu0 0.0
    %281 = vmatpush2.xpose.msra.mxu0 0.0
    %282 = vmatprep.subr.mxu0 0.0
    %283 = vmatpush2.xpose.msra.mxu0 0.0
    %284 = vmatprep.subr.mxu0 0.0
    %285 = vmatpush2.xpose.msra.mxu0 0.0
    %286 = vmatprep.subr.mxu0 0.0
    %287 = vmatpush2.xpose.msra.mxu0 0.0
    %288 = vmatprep.subr.mxu0 0.0
    %289 = vmatpush2.xpose.msra.mxu0 0.0
    %290 = vmatprep.mubr.f32.mxu0 %v132
    %291 = vmatmul.mubr.f32.gmra.mxu0 %v130
    %v292 = vpop.f32.mrf.mxu0
    %v293 = vadd.f32 %v223, %v292
    %v294 = vpop.f32.mrf.mxu0
    %295 = vdwg.mxu0
    %296 = vmatprep.subr.mxu0 0.0
    %297 = vmatpush1.xpose.msra.mxu0 0.0
    %298 = vmatprep.subr.mxu0 0.0
    %299 = vmatpush1.xpose.msra.mxu0 0.0
    %300 = vmatprep.subr.mxu0 0.0
    %301 = vmatpush1.xpose.msra.mxu0 0.0
    %302 = vmatprep.subr.mxu0 0.0
    %303 = vmatpush1.xpose.msra.mxu0 0.0
    %304 = vmatprep.subr.mxu0 0.0
    %305 = vmatpush1.xpose.msra.mxu0 0.0
    %306 = vmatprep.subr.mxu0 0.0
    %307 = vmatpush1.xpose.msra.mxu0 0.0
    %308 = vmatprep.subr.mxu0 0.0
    %309 = vmatpush1.xpose.msra.mxu0 0.0
    %310 = vmatprep.subr.mxu0 0.0
    %311 = vmatpush1.xpose.msra.mxu0 0.0
    %312 = vmatprep.subr.mxu0 0.0
    %313 = vmatpush1.xpose.msra.mxu0 0.0
    %314 = vmatprep.subr.mxu0 0.0
    %315 = vmatpush1.xpose.msra.mxu0 0.0
    %316 = vmatprep.subr.mxu0 0.0
    %317 = vmatpush1.xpose.msra.mxu0 0.0
    %318 = vmatprep.subr.mxu0 0.0
    %319 = vmatpush1.xpose.msra.mxu0 0.0
    %320 = vmatprep.subr.mxu0 0.0
    %321 = vmatpush1.xpose.msra.mxu0 0.0
    %322 = vmatprep.subr.mxu0 0.0
    %323 = vmatpush1.xpose.msra.mxu0 0.0
    %324 = vmatprep.subr.mxu0 0.0
    %325 = vmatpush1.xpose.msra.mxu0 0.0
    %326 = vmatprep.subr.mxu0 %v152
    %327 = vmatpush1.xpose.msra.mxu0 %v106
    %328 = vmatprep.subr.mxu0 0.0
    %329 = vmatpush2.xpose.msra.mxu0 0.0
    %330 = vmatprep.subr.mxu0 0.0
    %331 = vmatpush2.xpose.msra.mxu0 0.0
    %332 = vmatprep.subr.mxu0 0.0
    %333 = vmatpush2.xpose.msra.mxu0 0.0
    %334 = vmatprep.subr.mxu0 0.0
    %335 = vmatpush2.xpose.msra.mxu0 0.0
    %336 = vmatprep.subr.mxu0 0.0
    %337 = vmatpush2.xpose.msra.mxu0 0.0
    %338 = vmatprep.subr.mxu0 0.0
    %339 = vmatpush2.xpose.msra.mxu0 0.0
    %340 = vmatprep.subr.mxu0 0.0
    %341 = vmatpush2.xpose.msra.mxu0 0.0
    %342 = vmatprep.subr.mxu0 0.0
    %343 = vmatpush2.xpose.msra.mxu0 0.0
    %344 = vmatprep.subr.mxu0 0.0
    %345 = vmatpush2.xpose.msra.mxu0 0.0
    %346 = vmatprep.subr.mxu0 0.0
    %347 = vmatpush2.xpose.msra.mxu0 0.0
    %348 = vmatprep.subr.mxu0 0.0
    %349 = vmatpush2.xpose.msra.mxu0 0.0
    %350 = vmatprep.subr.mxu0 0.0
    %351 = vmatpush2.xpose.msra.mxu0 0.0
    %352 = vmatprep.subr.mxu0 0.0
    %353 = vmatpush2.xpose.msra.mxu0 0.0
    %354 = vmatprep.subr.mxu0 0.0
    %355 = vmatpush2.xpose.msra.mxu0 0.0
    %356 = vmatprep.subr.mxu0 0.0
    %357 = vmatpush2.xpose.msra.mxu0 0.0
    %358 = vmatprep.subr.mxu0 0.0
    %359 = vmatpush2.xpose.msra.mxu0 0.0
    %360 = vmatprep.mubr.f32.mxu0 %v140
    %361 = vmatmul.mubr.f32.gmra.mxu0 %v139
    %v362 = vpop.f32.mrf.mxu0
    %v363 = vadd.f32 %v293, %v362
    %v364 = vpop.f32.mrf.mxu0
    %365 = vdwg.mxu0
    %vm366 = vcmask 17408
    %367 = vst.msk [vmem:[#allocation12] sm:$0x3] %vm366, %v363
    // Predicated region
    $region46: #{tpu_custom_call.1} parent=1 // pred_check
      _
    $region47: #{tpu_custom_call.1} parent=1 // pred_check_branch
      %369 = sbr.rel (0) target = $region49
    $region48: #{tpu_custom_call.1} parent=1 // pred_region
      %s371 = ssub.s32 32, 32
      %372 = vsyncadd [#allocation4], %s371
      %s374 = sshll.u32 [#allocation12], 4
      %s375 = int_to_ptr.vmem [resolvable:$true] %s374
      %377 = dma.vmem_to_hbm [thread:$0]  %s375, 32, %s6, [#allocation4]
    $region49: #{tpu_custom_call.1} parent=1 // pred_fallthru
      _
    // Predicated region
    $region50: #{tpu_custom_call.1} parent=1 // pred_check
      _
    $region51: #{tpu_custom_call.1} parent=1 // pred_check_branch
      %379 = sbr.rel (0) target = $region53
    $region52: #{tpu_custom_call.1} parent=1 // pred_region
      %380 = dma.done [#allocation4], 32
    $region53: #{tpu_custom_call.1} parent=1 // pred_fallthru
      _
    %381 = vsyncpa [#allocation3], 1
    %382 = vsyncpa [#allocation8], 1
    %383 = vsyncpa [#allocation11], 1
    %384 = vsyncpa [#allocation4], 1
    %385 = vsyncpa [#allocation5], 1

</llo_original>
